<compile_context>
chip_gen: v5e
topology: v5e:2x2
jax: 0.10.0
libtpu: 0.0.40
codegen_flags: <defaults>
</compile_context>

<pallas_src>
import functools

import jax
import jax.numpy as jnp
from jax.experimental import pallas as pl
from jax.experimental.pallas import tpu as pltpu


def _round_up(x, m):
    return ((x + m - 1) // m) * m


def _softpool_kernel(x_ref, o_ref, *, kernel_size, stride, padding, length,
                     band, matmul_dtype):
    tn = o_ref.shape[-1]
    c = pl.program_id(1)
    col0 = c * tn                                       # first output column of block
    start = pl.multiple_of(c * (tn * stride), 128)      # band start (padded coords)

    # Elementwise chain in f32 (only over the band that feeds this block).
    xb = x_ref[:, pl.ds(start, band)].astype(jnp.float32)          # (tm, band)
    x_exp = jnp.exp(jnp.clip(xb, -10.0, 10.0))

    # Banded 0/1 window-membership tile for this block of output columns,
    # generated from pure index arithmetic (never touches HBM).  Left/right pad
    # columns of the pre-padded input (i < padding or i >= padding + length) are
    # excluded, matching AvgPool1d(count_include_pad=False) in the cancelled ratio.
    i = jax.lax.broadcasted_iota(jnp.int32, (band, tn), 0) + start  # padded input coord
    j = jax.lax.broadcasted_iota(jnp.int32, (band, tn), 1) + col0   # output index
    w0 = j * stride                                                  # window start (padded)
    p = ((i >= w0) & (i < w0 + kernel_size)
         & (i >= padding) & (i < padding + length)).astype(matmul_dtype)

    # Two dots against the same P (single RHS weight set, no concat copy).
    num = jnp.dot((x_exp * xb).astype(matmul_dtype), p,
                  preferred_element_type=jnp.float32)               # SumPool(x_exp * x)
    den = jnp.dot(x_exp.astype(matmul_dtype), p,
                  preferred_element_type=jnp.float32)               # SumPool(x_exp)

    # Valid columns have den >= kernel_size * exp(-10); the clamp only protects
    # ragged-edge / masked columns from producing inf/NaN (they are discarded).
    den = jnp.maximum(den, 1e-30)
    o_ref[...] = (num * pl.reciprocal(den, approx=False)).astype(o_ref.dtype)


def soft_pooling_1d(x, kernel_size, stride=None, padding=0, *,
                    row_tile=512, col_tile=512, matmul_dtype=None):
    """SoftPooling1D forward. x: (N, C, L) float array."""
    stride = kernel_size if stride is None else stride
    if kernel_size <= 0 or stride <= 0:
        raise ValueError("kernel_size and stride must be positive")
    if padding > kernel_size // 2:
        # PyTorch AvgPool1d precondition; beyond it a real output window could be
        # entirely padding (0/0).
        raise ValueError("padding must be <= kernel_size // 2")

    N, C, L = x.shape
    L_out = (L + 2 * padding - kernel_size) // stride + 1
    if L_out <= 0:
        raise ValueError("non-positive output length")
    rows = N * C
    itemsize = jnp.dtype(x.dtype).itemsize
    sublane = max(8, 32 // max(itemsize, 1))        # 8 (f32), 16 (bf16), 32 (i8)
    mm_dtype = jnp.float32 if matmul_dtype is None else matmul_dtype

    # --- Column tiling: tn is a multiple of 128 that divides round_up(L_out, 128).
    L_out_pad = _round_up(L_out, 128)
    m = L_out_pad // 128
    tn = 128
    for d in range(min(m, max(1, col_tile // 128)), 0, -1):
        if m % d == 0:
            tn = 128 * d
            break

    # --- Generation-aware VMEM budget (v7x: 64 MiB physical; v5e/v6e: 128 MiB).
    try:
        vmem_cap = int(pltpu.get_tpu_info().vmem_capacity_bytes)
    except Exception:
        vmem_cap = 64 * 1024 * 1024
    vmem_limit = (80 * 1024 * 1024 if vmem_cap >= 100 * 1024 * 1024
                  else 36 * 1024 * 1024)
    budget = vmem_limit - 6 * 1024 * 1024           # headroom for Mosaic scratch

    def _plan(tn_):
        nc_ = pl.cdiv(L_out, tn_)
        band_ = _round_up((tn_ - 1) * stride + kernel_size, 128)
        L_pad_ = max(padding + L, (nc_ - 1) * tn_ * stride + band_)
        # Per-step live VMEM: x double buffer + out double buffer + P tile
        # + ~4 f32 (tm, band) temporaries (band slice, x_exp, products).
        fixed = 4 * band_ * tn_
        per_tm = 2 * L_pad_ * itemsize + 2 * tn_ * itemsize + 16 * band_
        tm_ = (budget - fixed) // per_tm
        tm_ = min(tm_, row_tile, _round_up(rows, sublane))
        tm_ = max(sublane, (tm_ // sublane) * sublane)
        return nc_, band_, L_pad_, tm_

    nc, band, L_pad, tm = _plan(tn)
    if tm < 128 and tn > 128:
        # Keep the MXU M dimension healthy: trade column width for row height.
        tn = 128
        nc, band, L_pad, tm = _plan(tn)

    # --- Pre-pad x along L: `padding` zero columns on the left (window starts
    # become non-negative and 128-aligned) plus right alignment so every band
    # slice is in bounds.  Pad columns are masked out of P inside the kernel.
    x2 = x.reshape(rows, L)
    pad_r = L_pad - padding - L
    if padding or pad_r:
        x2 = jnp.pad(x2, ((0, 0), (padding, pad_r)))

    grid = (pl.cdiv(rows, tm), nc)

    # TODO(synk): for extreme L (where the 2*tm*L_pad input double buffer alone
    # dominates VMEM), move the banding into the input BlockSpec (element-offset
    # indexing) so only the band is DMA'd per column block instead of the row tile.
    out = pl.pallas_call(
        functools.partial(_softpool_kernel, kernel_size=kernel_size,
                          stride=stride, padding=padding, length=L, band=band,
                          matmul_dtype=mm_dtype),
        out_shape=jax.ShapeDtypeStruct((rows, L_out), x.dtype),
        grid=grid,
        in_specs=[
            # x block index is constant along the column axis, so Pallas keeps
            # the row tile resident (no re-fetch) across consecutive c steps.
            pl.BlockSpec((tm, L_pad), lambda r, c: (r, 0)),
        ],
        out_specs=pl.BlockSpec((tm, tn), lambda r, c: (r, c)),
        compiler_params=pltpu.CompilerParams(
            dimension_semantics=("parallel", "arbitrary"),
            vmem_limit_bytes=vmem_limit,
        ),
        cost_estimate=pl.CostEstimate(
            flops=4 * rows * L_out_pad * band,
            transcendentals=rows * band * nc,
            bytes_accessed=rows * (L_pad + L_out) * itemsize,
        ),
    )(x2)

    return out.reshape(N, C, L_out)


def _reference(x, kernel_size, stride=None, padding=0):
    """Pure-JAX reference mirroring the PyTorch module (sanity check)."""
    stride = kernel_size if stride is None else stride
    N, C, L = x.shape
    L_out = (L + 2 * padding - kernel_size) // stride + 1

    x_exp = jnp.exp(jnp.clip(x, -10.0, 10.0))
    pad = [(0, 0), (0, 0), (padding, padding)]
    num_p = jnp.pad(x_exp * x, pad)
    den_p = jnp.pad(x_exp, pad)
    nums, dens = [], []
    for j in range(L_out):
        s = j * stride
        nums.append(jnp.sum(num_p[:, :, s:s + kernel_size], axis=-1))
        dens.append(jnp.sum(den_p[:, :, s:s + kernel_size], axis=-1))
    # AvgPool divisors are identical for numerator and denominator -> cancel.
    return jnp.stack(nums, axis=-1) / jnp.stack(dens, axis=-1)


if __name__ == "__main__":
    key = jax.random.PRNGKey(0)

    # 1) Default AvgPool1d(kernel_size=2): stride=2, padding=0 (the module's common use).
    x = jax.random.normal(key, (2, 4, 16), dtype=jnp.float32)
    out = jax.block_until_ready(soft_pooling_1d(x, kernel_size=2))
    ref = _reference(x, kernel_size=2)
    assert out.shape == (2, 4, 8), out.shape
    assert jnp.allclose(out, ref, atol=1e-5, rtol=1e-5), "mismatch (k=2)"

    # 2) Overlapping / padded configuration (exercises the masked-pad window path).
    out2 = jax.block_until_ready(soft_pooling_1d(x, kernel_size=3, stride=2, padding=1))
    ref2 = _reference(x, kernel_size=3, stride=2, padding=1)
    assert out2.shape == ref2.shape, (out2.shape, ref2.shape)
    assert jnp.allclose(out2, ref2, atol=1e-5, rtol=1e-5), "mismatch (k=3,s=2,p=1)"

    # 3) Multi column-block banded path + ragged edges
    #    (rows = 9 not a multiple of 8, L_out = 140 not a multiple of 128).
    x3 = jax.random.normal(jax.random.PRNGKey(0), (3, 3, 280), dtype=jnp.float32)
    out3 = jax.block_until_ready(soft_pooling_1d(x3, kernel_size=2, col_tile=128))
    ref3 = _reference(x3, kernel_size=2)
    assert out3.shape == ref3.shape, (out3.shape, ref3.shape)
    assert jnp.allclose(out3, ref3, atol=1e-5, rtol=1e-5), "mismatch (banded)"

    print("KERNEL_OK")
</pallas_src>

<mosaic_0001>
module attributes {stable_mosaic.version = 11 : i64} {
  func.func @_softpool_kernel(%arg0: i32, %arg1: i32, %arg2: memref<8x256xf32, #tpu.memory_space<vmem>>, %arg3: memref<8x128xf32, #tpu.memory_space<vmem>>) attributes {dimension_semantics = [#tpu.dimension_semantics<parallel>, #tpu.dimension_semantics<arbitrary>], iteration_bounds = array<i64: 1, 1>, scalar_prefetch = 0 : i64, scratch_operands = 0 : i64, tpu.core_type = #tpu.core_type<tc>, window_params = [{transform_indices = @transform_0, window_bounds = array<i64: 8, 256>}, {transform_indices = @transform_1, window_bounds = array<i64: 8, 128>}]} {
    %c128_i32 = arith.constant 128 : i32
    %0 = arith.muli %arg1, %c128_i32 : i32
    %c256_i32 = arith.constant 256 : i32
    %1 = arith.muli %arg1, %c256_i32 : i32
    %2 = tpu.assume_multiple %1, 128 : i32
    %c0 = arith.constant 0 : index
    %3 = arith.index_cast %2 : i32 to index
    %4 = vector.load %arg2[%c0, %3] : memref<8x256xf32, #tpu.memory_space<vmem>>, vector<8x256xf32>
    %cst = arith.constant -1.000000e+01 : f32
    %cst_0 = arith.constant 1.000000e+01 : f32
    %5 = vector.broadcast %cst : f32 to vector<8x256xf32>
    %6 = arith.maximumf %5, %4 : vector<8x256xf32>
    %7 = vector.broadcast %cst_0 : f32 to vector<8x256xf32>
    %8 = arith.minimumf %7, %6 : vector<8x256xf32>
    %9 = math.exp %8 : vector<8x256xf32>
    %10 = tpu.iota {dimensions = array<i32: 0>} : vector<256x128xi32>
    %11 = vector.broadcast %2 : i32 to vector<256x128xi32>
    %12 = arith.addi %10, %11 : vector<256x128xi32>
    %13 = tpu.iota {dimensions = array<i32: 1>} : vector<256x128xi32>
    %14 = vector.broadcast %0 : i32 to vector<256x128xi32>
    %15 = arith.addi %13, %14 : vector<256x128xi32>
    %c2_i32 = arith.constant 2 : i32
    %16 = vector.broadcast %c2_i32 : i32 to vector<256x128xi32>
    %17 = arith.muli %15, %16 : vector<256x128xi32>
    %18 = arith.cmpi sge, %12, %17 : vector<256x128xi32>
    %c2_i32_1 = arith.constant 2 : i32
    %19 = vector.broadcast %c2_i32_1 : i32 to vector<256x128xi32>
    %20 = arith.addi %17, %19 : vector<256x128xi32>
    %21 = arith.cmpi slt, %12, %20 : vector<256x128xi32>
    %22 = arith.andi %18, %21 : vector<256x128xi1>
    %c0_i32 = arith.constant 0 : i32
    %23 = vector.broadcast %c0_i32 : i32 to vector<256x128xi32>
    %24 = arith.cmpi sge, %12, %23 : vector<256x128xi32>
    %25 = arith.andi %22, %24 : vector<256x128xi1>
    %c16_i32 = arith.constant 16 : i32
    %26 = vector.broadcast %c16_i32 : i32 to vector<256x128xi32>
    %27 = arith.cmpi slt, %12, %26 : vector<256x128xi32>
    %28 = arith.andi %25, %27 : vector<256x128xi1>
    %29 = arith.extui %28 : vector<256x128xi1> to vector<256x128xi32>
    %30 = arith.sitofp %29 : vector<256x128xi32> to vector<256x128xf32>
    %31 = arith.mulf %9, %4 : vector<8x256xf32>
    %cst_2 = arith.constant dense<0.000000e+00> : vector<8x128xf32>
    %32 = tpu.matmul %31, %30, %cst_2 {dimension_numbers = #tpu.dot_dimension_numbers<[1], [0], [0], [1], [0, 0, 1, 1], [], []>} : vector<8x256xf32>, vector<256x128xf32>, vector<8x128xf32> -> vector<8x128xf32>
    %cst_3 = arith.constant dense<0.000000e+00> : vector<8x128xf32>
    %33 = tpu.matmul %9, %30, %cst_3 {dimension_numbers = #tpu.dot_dimension_numbers<[1], [0], [0], [1], [0, 0, 1, 1], [], []>} : vector<8x256xf32>, vector<256x128xf32>, vector<8x128xf32> -> vector<8x128xf32>
    %cst_4 = arith.constant 1.000000e-30 : f32
    %34 = vector.broadcast %cst_4 : f32 to vector<8x128xf32>
    %35 = arith.maximumf %33, %34 : vector<8x128xf32>
    %36 = tpu.reciprocal %35 : vector<8x128xf32> -> vector<8x128xf32>
    %37 = arith.mulf %32, %36 : vector<8x128xf32>
    %c0_5 = arith.constant 0 : index
    %c0_6 = arith.constant 0 : index
    %38 = vector.load %arg3[%c0_5, %c0_6] : memref<8x128xf32, #tpu.memory_space<vmem>>, vector<8x128xf32>
    tpu.vector_store %arg3[%c0_5, %c0_6], %37 {strides = array<i32>} : memref<8x128xf32, #tpu.memory_space<vmem>>, vector<8x128xf32>,
    return
  }
  func.func @transform_0(%arg0: i32, %arg1: i32) -> (i32, i32) {
    %c0_i32 = arith.constant 0 : i32
    %c0_i32_0 = arith.constant 0 : i32
    return %arg0, %c0_i32 : i32, i32
  }
  func.func @transform_1(%arg0: i32, %arg1: i32) -> (i32, i32) {
    %c0_i32 = arith.constant 0 : i32
    return %arg0, %arg1 : i32, i32
  }
}

</mosaic_0001>

<llo_original>
// kernel: tpu_custom_call.1
$region0: #{tpu_custom_call.1}
  #allocation0 [shape = 'u32[]', space=smem, size = 0x4, offset = 0x4, fixed_abs, tag = 'smem constant byte address 0x4 - core index']
  #allocation1 [shape = 'u32[72,128]{1,0:T(1,128)}', space=vmem, size = 0x9000, scoped, tag = 'internal scratch']
  %s0 = inlined_call_operand.hbm [shape: f32[8,256], index: 0, kind: input, shape index: {}]
  %s1 = inlined_call_operand.hbm [shape: f32[8,8], index: 1, kind: output, shape index: {}]
  %s2 = sld [smem:[#allocation0]]
  $region18: #{tpu_custom_call.1} parent=0
    _
  %s4 = ssub.s32 1, %s2
  %s5 = scalar_select 0, %s4, %s2
  $region1: #{tpu_custom_call.1} parent=0
    #allocation2 [shape = 'u8[8192]{0}', space=vmem, size = 0x2000, scoped, tag = 'input window, operand 0, single buffered']
    #allocation3 [shape = 's32[1]{0}', space=sflag, size = 0x4, scoped, tag = 'scoped memory for tpu_custom_call.1']
    #allocation4 [shape = 's32[1]{0}', space=sflag, size = 0x4, scoped, tag = 'scoped memory for tpu_custom_call.1']
    #allocation5 [shape = 'u8[4096]{0}', space=vmem, size = 0x1000, scoped, tag = 'output window, operand 0, single buffered']
    %6 = vsyncpa [#allocation3], 0
    %7 = vsyncpa [#allocation4], 0
    // Predicated region
    $region2: #{tpu_custom_call.1} parent=1 // pred_check
      _
    $region3: #{tpu_custom_call.1} parent=1 // pred_check_branch
      %9 = sbr.rel (0) target = $region5
    $region4: #{tpu_custom_call.1} parent=1 // pred_region
      %11 = vsyncadd [#allocation3], 0
      %s13 = sshll.u32 %s0, 4
      %s14 = int_to_ptr.hbm [resolvable:$true] %s13
      %s15 = sshll.u32 [#allocation2], 4
      %s16 = int_to_ptr.vmem [resolvable:$true] %s15
      %18 = dma.hbm_to_vmem [thread:$0]  %s14, 256, %s16, [#allocation3]
    $region5: #{tpu_custom_call.1} parent=1 // pred_fallthru
      _
    // Predicated region
    $region6: #{tpu_custom_call.1} parent=1 // pred_check
      _
    $region7: #{tpu_custom_call.1} parent=1 // pred_check_branch
      %20 = sbr.rel (0) target = $region9
    $region8: #{tpu_custom_call.1} parent=1 // pred_region
      %22 = dma.done [#allocation3], 256
    $region9: #{tpu_custom_call.1} parent=1 // pred_fallthru
      _
    %s23 = smul.u32 0, 128
    %s24 = smul.u32 0, 256
    %s25 = sshra.s32 %s24, 7
    %s26 = sand.u32 %s24, 127
    %s27 = smul.addr %s25, 8
    %s28 = scalar_lea.vmem [#allocation2], %s27
    %v29 = vld [vmem:[%s28] sm:$0xff]
    %v30 = vld [vmem:[%s28 + $0x8] sm:$0xff]
    %v31 = vmax.f32 %v29, -10.0
    %v32 = vmax.f32 %v30, -10.0
    %v33 = vmin.f32 %v31, 10.0
    %v34 = vmin.f32 %v32, 10.0
    %v35 = vmul.f32 %v33, 1.442695
    %v36 = vpow.pop %v35
    %v37 = vmul.f32 %v34, 1.442695
    %v38 = vpow.pop %v37
    %v39 = vlaneseq
    %v40 = vshrl.u32 %v39, 7
    %v41 = vadd.s32 %v40, 8
    %v42 = vadd.s32 %v40, 16
    %v43 = vadd.s32 %v40, 24
    %v44 = vadd.s32 %v40, 32
    %v45 = vadd.s32 %v40, 40
    %v46 = vadd.s32 %v40, 48
    %v47 = vadd.s32 %v40, 56
    %v48 = vadd.s32 %v40, 64
    %v49 = vadd.s32 %v40, 72
    %v50 = vadd.s32 %v40, 80
    %v51 = vadd.s32 %v40, 88
    %v52 = vadd.s32 %v40, 96
    %v53 = vadd.s32 %v40, 104
    %v54 = vadd.s32 %v40, 112
    %v55 = vadd.s32 %v40, 120
    %v56 = vadd.s32 %v40, 128
    %v57 = vadd.s32 %v40, 136
    %v58 = vadd.s32 %v40, 144
    %v59 = vadd.s32 %v40, 152
    %v60 = vadd.s32 %v40, 160
    %v61 = vadd.s32 %v40, 168
    %v62 = vadd.s32 %v40, 176
    %v63 = vadd.s32 %v40, 184
    %v64 = vadd.s32 %v40, 192
    %v65 = vadd.s32 %v40, 200
    %v66 = vadd.s32 %v40, 208
    %v67 = vadd.s32 %v40, 216
    %v68 = vadd.s32 %v40, 224
    %v69 = vadd.s32 %v40, 232
    %v70 = vadd.s32 %v40, 240
    %v71 = vadd.s32 %v40, 248
    %v72 = vstv %s24
    %v73 = vadd.s32 %v40, %v72
    %v74 = vadd.s32 %v41, %v72
    %v75 = vadd.s32 %v42, %v72
    %v76 = vadd.s32 %v43, %v72
    %v77 = vadd.s32 %v44, %v72
    %v78 = vadd.s32 %v45, %v72
    %v79 = vadd.s32 %v46, %v72
    %v80 = vadd.s32 %v47, %v72
    %v81 = vadd.s32 %v48, %v72
    %v82 = vadd.s32 %v49, %v72
    %v83 = vadd.s32 %v50, %v72
    %v84 = vadd.s32 %v51, %v72
    %v85 = vadd.s32 %v52, %v72
    %v86 = vadd.s32 %v53, %v72
    %v87 = vadd.s32 %v54, %v72
    %v88 = vadd.s32 %v55, %v72
    %v89 = vadd.s32 %v56, %v72
    %v90 = vadd.s32 %v57, %v72
    %v91 = vadd.s32 %v58, %v72
    %v92 = vadd.s32 %v59, %v72
    %v93 = vadd.s32 %v60, %v72
    %v94 = vadd.s32 %v61, %v72
    %v95 = vadd.s32 %v62, %v72
    %v96 = vadd.s32 %v63, %v72
    %v97 = vadd.s32 %v64, %v72
    %v98 = vadd.s32 %v65, %v72
    %v99 = vadd.s32 %v66, %v72
    %v100 = vadd.s32 %v67, %v72
    %v101 = vadd.s32 %v68, %v72
    %v102 = vadd.s32 %v69, %v72
    %v103 = vadd.s32 %v70, %v72
    %v104 = vadd.s32 %v71, %v72
    %v105 = vlaneseq
    %v106 = vand.u32 %v105, 127
    %v107 = vstv %s23
    %v108 = vadd.s32 %v106, %v107
    %v109 = vmul.u32 %v108, 2
    %vm110 = vcmp.ge.s32.totalorder %v73, %v109
    %vm111 = vcmp.ge.s32.totalorder %v74, %v109
    %vm112 = vcmp.ge.s32.totalorder %v75, %v109
    %vm113 = vcmp.ge.s32.totalorder %v76, %v109
    %vm114 = vcmp.ge.s32.totalorder %v77, %v109
    %vm115 = vcmp.ge.s32.totalorder %v78, %v109
    %vm116 = vcmp.ge.s32.totalorder %v79, %v109
    %vm117 = vcmp.ge.s32.totalorder %v80, %v109
    %vm118 = vcmp.ge.s32.totalorder %v81, %v109
    %vm119 = vcmp.ge.s32.totalorder %v82, %v109
    %vm120 = vcmp.ge.s32.totalorder %v83, %v109
    %vm121 = vcmp.ge.s32.totalorder %v84, %v109
    %vm122 = vcmp.ge.s32.totalorder %v85, %v109
    %vm123 = vcmp.ge.s32.totalorder %v86, %v109
    %vm124 = vcmp.ge.s32.totalorder %v87, %v109
    %vm125 = vcmp.ge.s32.totalorder %v88, %v109
    %vm126 = vcmp.ge.s32.totalorder %v89, %v109
    %vm127 = vcmp.ge.s32.totalorder %v90, %v109
    %vm128 = vcmp.ge.s32.totalorder %v91, %v109
    %vm129 = vcmp.ge.s32.totalorder %v92, %v109
    %vm130 = vcmp.ge.s32.totalorder %v93, %v109
    %vm131 = vcmp.ge.s32.totalorder %v94, %v109
    %vm132 = vcmp.ge.s32.totalorder %v95, %v109
    %vm133 = vcmp.ge.s32.totalorder %v96, %v109
    %vm134 = vcmp.ge.s32.totalorder %v97, %v109
    %vm135 = vcmp.ge.s32.totalorder %v98, %v109
    %vm136 = vcmp.ge.s32.totalorder %v99, %v109
    %vm137 = vcmp.ge.s32.totalorder %v100, %v109
    %vm138 = vcmp.ge.s32.totalorder %v101, %v109
    %vm139 = vcmp.ge.s32.totalorder %v102, %v109
    %vm140 = vcmp.ge.s32.totalorder %v103, %v109
    %vm141 = vcmp.ge.s32.totalorder %v104, %v109
    %v142 = vadd.s32 %v109, 2
    %vm143 = vcmp.lt.s32.totalorder %v73, %v142
    %vm144 = vcmp.lt.s32.totalorder %v74, %v142
    %vm145 = vcmp.lt.s32.totalorder %v75, %v142
    %vm146 = vcmp.lt.s32.totalorder %v76, %v142
    %vm147 = vcmp.lt.s32.totalorder %v77, %v142
    %vm148 = vcmp.lt.s32.totalorder %v78, %v142
    %vm149 = vcmp.lt.s32.totalorder %v79, %v142
    %vm150 = vcmp.lt.s32.totalorder %v80, %v142
    %vm151 = vcmp.lt.s32.totalorder %v81, %v142
    %vm152 = vcmp.lt.s32.totalorder %v82, %v142
    %vm153 = vcmp.lt.s32.totalorder %v83, %v142
    %vm154 = vcmp.lt.s32.totalorder %v84, %v142
    %vm155 = vcmp.lt.s32.totalorder %v85, %v142
    %vm156 = vcmp.lt.s32.totalorder %v86, %v142
    %vm157 = vcmp.lt.s32.totalorder %v87, %v142
    %vm158 = vcmp.lt.s32.totalorder %v88, %v142
    %vm159 = vcmp.lt.s32.totalorder %v89, %v142
    %vm160 = vcmp.lt.s32.totalorder %v90, %v142
    %vm161 = vcmp.lt.s32.totalorder %v91, %v142
    %vm162 = vcmp.lt.s32.totalorder %v92, %v142
    %vm163 = vcmp.lt.s32.totalorder %v93, %v142
    %vm164 = vcmp.lt.s32.totalorder %v94, %v142
    %vm165 = vcmp.lt.s32.totalorder %v95, %v142
    %vm166 = vcmp.lt.s32.totalorder %v96, %v142
    %vm167 = vcmp.lt.s32.totalorder %v97, %v142
    %vm168 = vcmp.lt.s32.totalorder %v98, %v142
    %vm169 = vcmp.lt.s32.totalorder %v99, %v142
    %vm170 = vcmp.lt.s32.totalorder %v100, %v142
    %vm171 = vcmp.lt.s32.totalorder %v101, %v142
    %vm172 = vcmp.lt.s32.totalorder %v102, %v142
    %vm173 = vcmp.lt.s32.totalorder %v103, %v142
    %vm174 = vcmp.lt.s32.totalorder %v104, %v142
    %vm175 = vmand %vm110, %vm143
    %vm176 = vmand %vm111, %vm144
    %vm177 = vmand %vm112, %vm145
    %vm178 = vmand %vm113, %vm146
    %vm179 = vmand %vm114, %vm147
    %vm180 = vmand %vm115, %vm148
    %vm181 = vmand %vm116, %vm149
    %vm182 = vmand %vm117, %vm150
    %vm183 = vmand %vm118, %vm151
    %vm184 = vmand %vm119, %vm152
    %vm185 = vmand %vm120, %vm153
    %vm186 = vmand %vm121, %vm154
    %vm187 = vmand %vm122, %vm155
    %vm188 = vmand %vm123, %vm156
    %vm189 = vmand %vm124, %vm157
    %vm190 = vmand %vm125, %vm158
    %vm191 = vmand %vm126, %vm159
    %vm192 = vmand %vm127, %vm160
    %vm193 = vmand %vm128, %vm161
    %vm194 = vmand %vm129, %vm162
    %vm195 = vmand %vm130, %vm163
    %vm196 = vmand %vm131, %vm164
    %vm197 = vmand %vm132, %vm165
    %vm198 = vmand %vm133, %vm166
    %vm199 = vmand %vm134, %vm167
    %vm200 = vmand %vm135, %vm168
    %vm201 = vmand %vm136, %vm169
    %vm202 = vmand %vm137, %vm170
    %vm203 = vmand %vm138, %vm171
    %vm204 = vmand %vm139, %vm172
    %vm205 = vmand %vm140, %vm173
    %vm206 = vmand %vm141, %vm174
    %vm207 = vcmp.ge.s32.totalorder %v73, 0
    %vm208 = vcmp.ge.s32.totalorder %v74, 0
    %vm209 = vcmp.ge.s32.totalorder %v75, 0
    %vm210 = vcmp.ge.s32.totalorder %v76, 0
    %vm211 = vcmp.ge.s32.totalorder %v77, 0
    %vm212 = vcmp.ge.s32.totalorder %v78, 0
    %vm213 = vcmp.ge.s32.totalorder %v79, 0
    %vm214 = vcmp.ge.s32.totalorder %v80, 0
    %vm215 = vcmp.ge.s32.totalorder %v81, 0
    %vm216 = vcmp.ge.s32.totalorder %v82, 0
    %vm217 = vcmp.ge.s32.totalorder %v83, 0
    %vm218 = vcmp.ge.s32.totalorder %v84, 0
    %vm219 = vcmp.ge.s32.totalorder %v85, 0
    %vm220 = vcmp.ge.s32.totalorder %v86, 0
    %vm221 = vcmp.ge.s32.totalorder %v87, 0
    %vm222 = vcmp.ge.s32.totalorder %v88, 0
    %vm223 = vcmp.ge.s32.totalorder %v89, 0
    %vm224 = vcmp.ge.s32.totalorder %v90, 0
    %vm225 = vcmp.ge.s32.totalorder %v91, 0
    %vm226 = vcmp.ge.s32.totalorder %v92, 0
    %vm227 = vcmp.ge.s32.totalorder %v93, 0
    %vm228 = vcmp.ge.s32.totalorder %v94, 0
    %vm229 = vcmp.ge.s32.totalorder %v95, 0
    %vm230 = vcmp.ge.s32.totalorder %v96, 0
    %vm231 = vcmp.ge.s32.totalorder %v97, 0
    %vm232 = vcmp.ge.s32.totalorder %v98, 0
    %vm233 = vcmp.ge.s32.totalorder %v99, 0
    %vm234 = vcmp.ge.s32.totalorder %v100, 0
    %vm235 = vcmp.ge.s32.totalorder %v101, 0
    %vm236 = vcmp.ge.s32.totalorder %v102, 0
    %vm237 = vcmp.ge.s32.totalorder %v103, 0
    %vm238 = vcmp.ge.s32.totalorder %v104, 0
    %vm239 = vmand %vm175, %vm207
    %vm240 = vmand %vm176, %vm208
    %vm241 = vmand %vm177, %vm209
    %vm242 = vmand %vm178, %vm210
    %vm243 = vmand %vm179, %vm211
    %vm244 = vmand %vm180, %vm212
    %vm245 = vmand %vm181, %vm213
    %vm246 = vmand %vm182, %vm214
    %vm247 = vmand %vm183, %vm215
    %vm248 = vmand %vm184, %vm216
    %vm249 = vmand %vm185, %vm217
    %vm250 = vmand %vm186, %vm218
    %vm251 = vmand %vm187, %vm219
    %vm252 = vmand %vm188, %vm220
    %vm253 = vmand %vm189, %vm221
    %vm254 = vmand %vm190, %vm222
    %vm255 = vmand %vm191, %vm223
    %vm256 = vmand %vm192, %vm224
    %vm257 = vmand %vm193, %vm225
    %vm258 = vmand %vm194, %vm226
    %vm259 = vmand %vm195, %vm227
    %vm260 = vmand %vm196, %vm228
    %vm261 = vmand %vm197, %vm229
    %vm262 = vmand %vm198, %vm230
    %vm263 = vmand %vm199, %vm231
    %vm264 = vmand %vm200, %vm232
    %vm265 = vmand %vm201, %vm233
    %vm266 = vmand %vm202, %vm234
    %vm267 = vmand %vm203, %vm235
    %vm268 = vmand %vm204, %vm236
    %vm269 = vmand %vm205, %vm237
    %vm270 = vmand %vm206, %vm238
    %vm271 = vcmp.lt.s32.totalorder %v73, 16
    %vm272 = vcmp.lt.s32.totalorder %v74, 16
    %vm273 = vcmp.lt.s32.totalorder %v75, 16
    %vm274 = vcmp.lt.s32.totalorder %v76, 16
    %vm275 = vcmp.lt.s32.totalorder %v77, 16
    %vm276 = vcmp.lt.s32.totalorder %v78, 16
    %vm277 = vcmp.lt.s32.totalorder %v79, 16
    %vm278 = vcmp.lt.s32.totalorder %v80, 16
    %vm279 = vcmp.lt.s32.totalorder %v81, 16
    %vm280 = vcmp.lt.s32.totalorder %v82, 16
    %vm281 = vcmp.lt.s32.totalorder %v83, 16
    %vm282 = vcmp.lt.s32.totalorder %v84, 16
    %vm283 = vcmp.lt.s32.totalorder %v85, 16
    %vm284 = vcmp.lt.s32.totalorder %v86, 16
    %vm285 = vcmp.lt.s32.totalorder %v87, 16
    %vm286 = vcmp.lt.s32.totalorder %v88, 16
    %vm287 = vcmp.lt.s32.totalorder %v89, 16
    %vm288 = vcmp.lt.s32.totalorder %v90, 16
    %vm289 = vcmp.lt.s32.totalorder %v91, 16
    %vm290 = vcmp.lt.s32.totalorder %v92, 16
    %vm291 = vcmp.lt.s32.totalorder %v93, 16
    %vm292 = vcmp.lt.s32.totalorder %v94, 16
    %vm293 = vcmp.lt.s32.totalorder %v95, 16
    %vm294 = vcmp.lt.s32.totalorder %v96, 16
    %vm295 = vcmp.lt.s32.totalorder %v97, 16
    %vm296 = vcmp.lt.s32.totalorder %v98, 16
    %vm297 = vcmp.lt.s32.totalorder %v99, 16
    %vm298 = vcmp.lt.s32.totalorder %v100, 16
    %vm299 = vcmp.lt.s32.totalorder %v101, 16
    %vm300 = vcmp.lt.s32.totalorder %v102, 16
    %vm301 = vcmp.lt.s32.totalorder %v103, 16
    %vm302 = vcmp.lt.s32.totalorder %v104, 16
    %vm303 = vmand %vm239, %vm271
    %vm304 = vmand %vm240, %vm272
    %vm305 = vmand %vm241, %vm273
    %vm306 = vmand %vm242, %vm274
    %vm307 = vmand %vm243, %vm275
    %vm308 = vmand %vm244, %vm276
    %vm309 = vmand %vm245, %vm277
    %vm310 = vmand %vm246, %vm278
    %vm311 = vmand %vm247, %vm279
    %vm312 = vmand %vm248, %vm280
    %vm313 = vmand %vm249, %vm281
    %vm314 = vmand %vm250, %vm282
    %vm315 = vmand %vm251, %vm283
    %vm316 = vmand %vm252, %vm284
    %vm317 = vmand %vm253, %vm285
    %vm318 = vmand %vm254, %vm286
    %vm319 = vmand %vm255, %vm287
    %vm320 = vmand %vm256, %vm288
    %vm321 = vmand %vm257, %vm289
    %vm322 = vmand %vm258, %vm290
    %vm323 = vmand %vm259, %vm291
    %vm324 = vmand %vm260, %vm292
    %vm325 = vmand %vm261, %vm293
    %vm326 = vmand %vm262, %vm294
    %vm327 = vmand %vm263, %vm295
    %vm328 = vmand %vm264, %vm296
    %vm329 = vmand %vm265, %vm297
    %vm330 = vmand %vm266, %vm298
    %vm331 = vmand %vm267, %vm299
    %vm332 = vmand %vm268, %vm300
    %vm333 = vmand %vm269, %vm301
    %vm334 = vmand %vm270, %vm302
    %v335 = vsel %vm303, 1, 0
    %v336 = vsel %vm304, 1, 0
    %v337 = vsel %vm305, 1, 0
    %v338 = vsel %vm306, 1, 0
    %v339 = vsel %vm307, 1, 0
    %v340 = vsel %vm308, 1, 0
    %v341 = vsel %vm309, 1, 0
    %v342 = vsel %vm310, 1, 0
    %v343 = vsel %vm311, 1, 0
    %v344 = vsel %vm312, 1, 0
    %v345 = vsel %vm313, 1, 0
    %v346 = vsel %vm314, 1, 0
    %v347 = vsel %vm315, 1, 0
    %v348 = vsel %vm316, 1, 0
    %v349 = vsel %vm317, 1, 0
    %v350 = vsel %vm318, 1, 0
    %v351 = vsel %vm319, 1, 0
    %v352 = vsel %vm320, 1, 0
    %v353 = vsel %vm321, 1, 0
    %v354 = vsel %vm322, 1, 0
    %v355 = vsel %vm323, 1, 0
    %v356 = vsel %vm324, 1, 0
    %v357 = vsel %vm325, 1, 0
    %v358 = vsel %vm326, 1, 0
    %v359 = vsel %vm327, 1, 0
    %v360 = vsel %vm328, 1, 0
    %v361 = vsel %vm329, 1, 0
    %v362 = vsel %vm330, 1, 0
    %v363 = vsel %vm331, 1, 0
    %v364 = vsel %vm332, 1, 0
    %v365 = vsel %vm333, 1, 0
    %v366 = vsel %vm334, 1, 0
    %v367 = vcvt.s32.f32 %v335
    %v368 = vcvt.s32.f32 %v336
    %v369 = vcvt.s32.f32 %v337
    %v370 = vcvt.s32.f32 %v338
    %v371 = vcvt.s32.f32 %v339
    %v372 = vcvt.s32.f32 %v340
    %v373 = vcvt.s32.f32 %v341
    %v374 = vcvt.s32.f32 %v342
    %v375 = vcvt.s32.f32 %v343
    %v376 = vcvt.s32.f32 %v344
    %v377 = vcvt.s32.f32 %v345
    %v378 = vcvt.s32.f32 %v346
    %v379 = vcvt.s32.f32 %v347
    %v380 = vcvt.s32.f32 %v348
    %v381 = vcvt.s32.f32 %v349
    %v382 = vcvt.s32.f32 %v350
    %v383 = vcvt.s32.f32 %v351
    %v384 = vcvt.s32.f32 %v352
    %v385 = vcvt.s32.f32 %v353
    %v386 = vcvt.s32.f32 %v354
    %v387 = vcvt.s32.f32 %v355
    %v388 = vcvt.s32.f32 %v356
    %v389 = vcvt.s32.f32 %v357
    %v390 = vcvt.s32.f32 %v358
    %v391 = vcvt.s32.f32 %v359
    %v392 = vcvt.s32.f32 %v360
    %v393 = vcvt.s32.f32 %v361
    %v394 = vcvt.s32.f32 %v362
    %v395 = vcvt.s32.f32 %v363
    %v396 = vcvt.s32.f32 %v364
    %v397 = vcvt.s32.f32 %v365
    %v398 = vcvt.s32.f32 %v366
    %v399 = vmul.f32 %v36, %v29
    %v400 = vmul.f32 %v38, %v30
    %401 = vmatpush.msra.mxu0 %v382
    %402 = vmatpush.msra.mxu0 %v381
    %403 = vmatpush.msra.mxu0 %v380
    %404 = vmatpush.msra.mxu0 %v379
    %405 = vmatpush.msra.mxu0 %v378
    %406 = vmatpush.msra.mxu0 %v377
    %407 = vmatpush.msra.mxu0 %v376
    %408 = vmatpush.msra.mxu0 %v375
    %409 = vmatpush.msra.mxu0 %v374
    %410 = vmatpush.msra.mxu0 %v373
    %411 = vmatpush.msra.mxu0 %v372
    %412 = vmatpush.msra.mxu0 %v371
    %413 = vmatpush.msra.mxu0 %v370
    %414 = vmatpush.msra.mxu0 %v369
    %415 = vmatpush.msra.mxu0 %v368
    %416 = vmatpush.msra.mxu0 %v367
    %417 = vmatmul.f32.gmra.mxu0 %v399
    %v418 = vpop.f32.mrf.mxu0
    %v419 = vadd.f32 0.0, %v418
    %420 = vdwg.mxu0
    %421 = vmatpush.msra.mxu0 %v398
    %422 = vmatpush.msra.mxu0 %v397
    %423 = vmatpush.msra.mxu0 %v396
    %424 = vmatpush.msra.mxu0 %v395
    %425 = vmatpush.msra.mxu0 %v394
    %426 = vmatpush.msra.mxu0 %v393
    %427 = vmatpush.msra.mxu0 %v392
    %428 = vmatpush.msra.mxu0 %v391
    %429 = vmatpush.msra.mxu0 %v390
    %430 = vmatpush.msra.mxu0 %v389
    %431 = vmatpush.msra.mxu0 %v388
    %432 = vmatpush.msra.mxu0 %v387
    %433 = vmatpush.msra.mxu0 %v386
    %434 = vmatpush.msra.mxu0 %v385
    %435 = vmatpush.msra.mxu0 %v384
    %436 = vmatpush.msra.mxu0 %v383
    %437 = vmatmul.f32.gmra.mxu0 %v400
    %v438 = vpop.f32.mrf.mxu0
    %v439 = vadd.f32 %v419, %v438
    %440 = vdwg.mxu0
    %441 = vmatpush.msra.mxu0 %v382
    %442 = vmatpush.msra.mxu0 %v381
    %443 = vmatpush.msra.mxu0 %v380
    %444 = vmatpush.msra.mxu0 %v379
    %445 = vmatpush.msra.mxu0 %v378
    %446 = vmatpush.msra.mxu0 %v377
    %447 = vmatpush.msra.mxu0 %v376
    %448 = vmatpush.msra.mxu0 %v375
    %449 = vmatpush.msra.mxu0 %v374
    %450 = vmatpush.msra.mxu0 %v373
    %451 = vmatpush.msra.mxu0 %v372
    %452 = vmatpush.msra.mxu0 %v371
    %453 = vmatpush.msra.mxu0 %v370
    %454 = vmatpush.msra.mxu0 %v369
    %455 = vmatpush.msra.mxu0 %v368
    %456 = vmatpush.msra.mxu0 %v367
    %457 = vmatmul.f32.gmra.mxu0 %v36
    %v458 = vpop.f32.mrf.mxu0
    %v459 = vadd.f32 0.0, %v458
    %460 = vdwg.mxu0
    %461 = vmatpush.msra.mxu0 %v398
    %462 = vmatpush.msra.mxu0 %v397
    %463 = vmatpush.msra.mxu0 %v396
    %464 = vmatpush.msra.mxu0 %v395
    %465 = vmatpush.msra.mxu0 %v394
    %466 = vmatpush.msra.mxu0 %v393
    %467 = vmatpush.msra.mxu0 %v392
    %468 = vmatpush.msra.mxu0 %v391
    %469 = vmatpush.msra.mxu0 %v390
    %470 = vmatpush.msra.mxu0 %v389
    %471 = vmatpush.msra.mxu0 %v388
    %472 = vmatpush.msra.mxu0 %v387
    %473 = vmatpush.msra.mxu0 %v386
    %474 = vmatpush.msra.mxu0 %v385
    %475 = vmatpush.msra.mxu0 %v384
    %476 = vmatpush.msra.mxu0 %v383
    %477 = vmatmul.f32.gmra.mxu0 %v38
    %v478 = vpop.f32.mrf.mxu0
    %v479 = vadd.f32 %v459, %v478
    %480 = vdwg.mxu0
    %v481 = vmax.f32 %v479, 1e-30
    %v482 = vrcp.pop %v481
    %v483 = vmul.f32 %v481, %v482
    %v484 = vsub.f32 1.0, %v483
    %v485 = vmul.f32 %v482, %v484
    %v486 = vadd.f32 %v482, %v485
    %vm487 = vweird.f32 %v481
    %vm488 = vweird.f32 %v482
    %vm489 = vmor %vm487, %vm488
    %v490 = vsel %vm489, %v482, %v486
    %v491 = vand.u32 2147483647, %v481
    %vm492 = vcmp.eq.f32.partialorder %v491, 8.507059e+37
    %v493 = vand.u32 %v481, 2147483648
    %v494 = vor.u32 1.1754944e-38, %v493
    %v495 = vsel %vm492, %v494, %v490
    %v496 = vmul.f32 %v439, %v495
    %497 = vst [vmem:[#allocation5] sm:$0xff] %v496
    // Predicated region
    $region10: #{tpu_custom_call.1} parent=1 // pred_check
      _
    $region11: #{tpu_custom_call.1} parent=1 // pred_check_branch
      %499 = sbr.rel (0) target = $region13
    $region12: #{tpu_custom_call.1} parent=1 // pred_region
      %501 = vsyncadd [#allocation4], 0
      %s503 = sshll.u32 [#allocation5], 4
      %s504 = int_to_ptr.vmem [resolvable:$true] %s503
      %s505 = sshll.u32 %s1, 4
      %s506 = int_to_ptr.hbm [resolvable:$true] %s505
      %508 = dma.vmem_to_hbm [thread:$0]  %s504, 128, %s506, [#allocation4]
    $region13: #{tpu_custom_call.1} parent=1 // pred_fallthru
      _
    // Predicated region
    $region14: #{tpu_custom_call.1} parent=1 // pred_check
      _
    $region15: #{tpu_custom_call.1} parent=1 // pred_check_branch
      %510 = sbr.rel (0) target = $region17
    $region16: #{tpu_custom_call.1} parent=1 // pred_region
      %512 = dma.done [#allocation4], 128
    $region17: #{tpu_custom_call.1} parent=1 // pred_fallthru
      _
    %513 = vsyncpa [#allocation3], 1
    %514 = vsyncpa [#allocation4], 1

</llo_original>
